<compile_context>
chip_gen: v7x
topology: tpu7x:2x2x1
jax: 0.10.0
libtpu: 0.0.40
codegen_flags: <defaults>
</compile_context>

<pallas_src>
import functools

import jax
import jax.numpy as jnp
import numpy as np
from jax.experimental import pallas as pl
from jax.experimental.pallas import tpu as pltpu


def _gat_kernel(f_ref, g_ref, adj_ref, h_ref, out_ref, *, num_heads, d_out, alpha):
    # f_ref:   (tq, H)        f_h = h_h @ a1_h for this tile's query rows (streamed)
    # g_ref:   (H, N)         g_h = h_h @ a2_h for all rows, pre-transposed (resident)
    # adj_ref: (tq, N) int8   adjacency rows for this tile (streamed, compressed)
    # h_ref:   (N, H*D_out)   projected features for all rows/heads (resident)
    # out_ref: (tq, H*D_out)  lane-dense output tile (torch.cat dim=1 layout)
    adj_edge = adj_ref[...].astype(jnp.int32) > 0                 # (tq, N) edge mask

    for hd in range(num_heads):                                   # H is small & static
        f_h = f_ref[:, hd:hd + 1]                                  # (tq, 1)
        g_h = g_ref[hd:hd + 1, :]                                  # (1, N) -- no transpose
        # a_input[j, k] @ a  ==  f[j] + g[k]  (rank-1, avoids the (N, N, 2D) tensor)
        e = f_h + g_h                                              # (tq, N)
        e = jnp.where(e > 0, e, alpha * e)                         # LeakyReLU(alpha)
        logits = jnp.where(adj_edge, e, -9e15)                     # exact torch masking

        # Row softmax (dim=1).
        m = jnp.max(logits, axis=1, keepdims=True)
        p = jnp.exp(logits - m)
        denom = jnp.sum(p, axis=1, keepdims=True)
        attn = p * pl.reciprocal(denom, approx=False)              # exact, f32-tight

        h_h = h_ref[:, hd * d_out:(hd + 1) * d_out]                # (N, D_out)
        out_ref[:, hd * d_out:(hd + 1) * d_out] = jnp.dot(
            attn, h_h, preferred_element_type=jnp.float32).astype(out_ref.dtype)


def _pick_row_tile(n):
    """Query-row tile: a multiple of 32 (int8 sublane quantum) or the full extent.
    Capped at 128 rows (v7x VMEM guidance); prefer >=2 tiles so megacore sharding
    splits real work."""
    if n % 32 != 0:
        return n
    cap = min(n // 2, 128)
    cap -= cap % 32
    for t in range(cap, 31, -32):
        if n % t == 0:
            return t
    return n


def gat_layer_forward(x, adj, W, a, alpha=0.2):
    """x: (N, D_in) f32, adj: (N, N), W: (H, D_in, D_out), a: (H, 1, 2*D_out)."""
    N, d_in = x.shape
    H, _, d_out = W.shape
    hd_total = H * d_out

    # ---- hoisted full-graph projections (computed ONCE, plain XLA matmuls) ----
    # Heads concatenated along the lane axis: h_all[:, h*D_out:(h+1)*D_out] = x @ W[h].
    w_all = jnp.transpose(W, (1, 0, 2)).reshape(d_in, hd_total)
    h_all = jnp.dot(x, w_all, preferred_element_type=jnp.float32)      # (N, H*D_out)

    a1 = a[:, 0, :d_out]                                                # (H, D_out)
    a2 = a[:, 0, d_out:]                                                # (H, D_out)
    h_heads = h_all.reshape(N, H, d_out)
    f_all = jnp.einsum('nhd,hd->nh', h_heads, a1).astype(jnp.float32)   # (N, H)
    g_t = jnp.einsum('nhd,hd->hn', h_heads, a2).astype(jnp.float32)     # (H, N) transposed

    # Compressed adjacency stream: int8 instead of an (N, N) f32 additive bias.
    adj_i8 = (adj > 0).astype(jnp.int8)                                 # (N, N)

    tq = _pick_row_tile(N)
    n_tiles = N // tq

    # Explicit VMEM budget (resident h_all + g, double-buffered streamed tiles,
    # live (tq, N) temporaries), with headroom; clamped to be safe on v5e..v7x.
    est = (N * hd_total * 4 + H * N * 4
           + 2 * tq * H * 4 + 2 * tq * N + 2 * tq * hd_total * 4
           + 10 * tq * N * 4)
    vmem_limit = int(min(max(2 * est + (1 << 20), 32 * 1024 * 1024),
                         64 * 1024 * 1024))

    kernel = functools.partial(_gat_kernel, num_heads=H, d_out=d_out, alpha=alpha)

    return pl.pallas_call(
        kernel,
        out_shape=jax.ShapeDtypeStruct((N, hd_total), jnp.float32),
        grid_spec=pltpu.PrefetchScalarGridSpec(
            num_scalar_prefetch=0,
            grid=(n_tiles,),
            in_specs=[
                pl.BlockSpec((tq, H), lambda i: (i, 0)),          # f tile (streamed)
                pl.BlockSpec((H, N), lambda i: (0, 0)),           # g^T (resident)
                pl.BlockSpec((tq, N), lambda i: (i, 0)),          # adjacency tile, int8
                pl.BlockSpec((N, hd_total), lambda i: (0, 0)),    # h_all (resident)
            ],
            out_specs=pl.BlockSpec((tq, hd_total), lambda i: (i, 0)),
        ),
        compiler_params=pltpu.CompilerParams(
            dimension_semantics=("parallel",),
            vmem_limit_bytes=vmem_limit,
        ),
    )(f_all, g_t, adj_i8, h_all)


def _reference_forward(x, adj, W, a, alpha=0.2):
    """Pure-JAX reference mirroring the PyTorch forward (eval mode)."""
    outs = []
    H = W.shape[0]
    d_out = W.shape[2]
    for i in range(H):
        h = x @ W[i]
        a1 = a[i, 0, :d_out]
        a2 = a[i, 0, d_out:]
        e = (h @ a1)[:, None] + (h @ a2)[None, :]
        e = jnp.where(e > 0, e, alpha * e)
        masked = jnp.where(adj > 0, e, -9e15)
        attn = jax.nn.softmax(masked, axis=1)
        outs.append(attn @ h)
    return jnp.concatenate(outs, axis=1)


def _xavier_uniform(key, shape, gain):
    fan_in, fan_out = shape[-2], shape[-1]
    bound = gain * np.sqrt(6.0 / (fan_in + fan_out))
    return jax.random.uniform(key, shape, jnp.float32, -bound, bound)


if __name__ == "__main__":
    # Small, module-consistent shapes (multi-tile grid: tq=32, 2 tiles).
    N = 64          # number of nodes
    input_dim = 16
    output_dim = 32
    num_heads = 4
    alpha = 0.2
    gain = 1.414

    root = jax.random.PRNGKey(0)
    kx, kadj, kw, ka = jax.random.split(root, 4)

    x = jax.random.normal(kx, (N, input_dim), jnp.float32)

    # Random sparse adjacency with self-loops, stored as float (adj > 0 mask).
    adj_rand = jax.random.uniform(kadj, (N, N))
    adj = (adj_rand > 0.7).astype(jnp.float32)
    adj = jnp.maximum(adj, jnp.eye(N, dtype=jnp.float32))

    # Deterministic parameter init (xavier_uniform, gain=1.414), stacked per head.
    W = jnp.stack([
        _xavier_uniform(jax.random.fold_in(kw, i), (input_dim, output_dim), gain)
        for i in range(num_heads)
    ])                                                    # (H, D_in, D_out)
    a = jnp.stack([
        _xavier_uniform(jax.random.fold_in(ka, i), (2 * output_dim, 1), gain)
        for i in range(num_heads)
    ]).reshape(num_heads, 1, 2 * output_dim)              # (H, 1, 2*D_out)

    out = gat_layer_forward(x, adj, W, a, alpha=alpha)
    out = jax.block_until_ready(out)

    ref = _reference_forward(x, adj, W, a, alpha=alpha)
    np.testing.assert_allclose(np.asarray(out), np.asarray(ref),
                               rtol=1e-4, atol=1e-4)
    assert out.shape == (N, num_heads * output_dim)

    print("KERNEL_OK")
</pallas_src>

<mosaic_0001>
module attributes {stable_mosaic.version = 11 : i64} {
  func.func @_gat_kernel(%arg0: i32, %arg1: memref<32x4xf32, #tpu.memory_space<vmem>>, %arg2: memref<4x64xf32, #tpu.memory_space<vmem>>, %arg3: memref<32x64xi8, #tpu.memory_space<vmem>>, %arg4: memref<64x128xf32, #tpu.memory_space<vmem>>, %arg5: memref<32x128xf32, #tpu.memory_space<vmem>>) attributes {dimension_semantics = [#tpu.dimension_semantics<parallel>], iteration_bounds = array<i64: 2>, scalar_prefetch = 0 : i64, scratch_operands = 0 : i64, tpu.core_type = #tpu.core_type<tc>, window_params = [{transform_indices = @transform_0, window_bounds = array<i64: 32, 4>}, {pipeline_mode = #tpu.pipeline_mode<synchronous>, transform_indices = @transform_1, window_bounds = array<i64: 4, 64>}, {transform_indices = @transform_2, window_bounds = array<i64: 32, 64>}, {pipeline_mode = #tpu.pipeline_mode<synchronous>, transform_indices = @transform_3, window_bounds = array<i64: 64, 128>}, {transform_indices = @transform_4, window_bounds = array<i64: 32, 128>}]} {
    %c0 = arith.constant 0 : index
    %c0_0 = arith.constant 0 : index
    %0 = vector.load %arg3[%c0, %c0_0] : memref<32x64xi8, #tpu.memory_space<vmem>>, vector<32x64xi8>
    %1 = arith.extsi %0 : vector<32x64xi8> to vector<32x64xi32>
    %c0_i32 = arith.constant 0 : i32
    %2 = vector.broadcast %c0_i32 : i32 to vector<32x64xi32>
    %3 = arith.cmpi sgt, %1, %2 : vector<32x64xi32>
    %c0_1 = arith.constant 0 : index
    %c0_2 = arith.constant 0 : index
    %4 = vector.load %arg1[%c0_1, %c0_2] : memref<32x4xf32, #tpu.memory_space<vmem>>, vector<32x1xf32>
    %c0_3 = arith.constant 0 : index
    %c0_4 = arith.constant 0 : index
    %5 = vector.load %arg2[%c0_3, %c0_4] : memref<4x64xf32, #tpu.memory_space<vmem>>, vector<1x64xf32>
    %6 = vector.broadcast %4 : vector<32x1xf32> to vector<32x64xf32>
    %7 = vector.broadcast %5 : vector<1x64xf32> to vector<32x64xf32>
    %8 = arith.addf %6, %7 : vector<32x64xf32>
    %cst = arith.constant 0.000000e+00 : f32
    %9 = vector.broadcast %cst : f32 to vector<32x64xf32>
    %10 = arith.cmpf ogt, %8, %9 : vector<32x64xf32>
    %cst_5 = arith.constant 2.000000e-01 : f32
    %11 = vector.broadcast %cst_5 : f32 to vector<32x64xf32>
    %12 = arith.mulf %11, %8 : vector<32x64xf32>
    %13 = arith.select %10, %8, %12 : vector<32x64xi1>, vector<32x64xf32>
    %cst_6 = arith.constant -9.000000e+15 : f32
    %14 = vector.broadcast %cst_6 : f32 to vector<32x64xf32>
    %15 = arith.select %3, %13, %14 : vector<32x64xi1>, vector<32x64xf32>
    %cst_7 = arith.constant dense<0xFF800000> : vector<32xf32>
    %16 = vector.multi_reduction <maximumf>, %15, %cst_7 [1] : vector<32x64xf32> to vector<32xf32>
    %17 = vector.shape_cast %16 : vector<32xf32> to vector<32x1xf32>
    %18 = vector.broadcast %17 : vector<32x1xf32> to vector<32x64xf32>
    %19 = arith.subf %15, %18 : vector<32x64xf32>
    %20 = math.exp %19 : vector<32x64xf32>
    %cst_8 = arith.constant dense<0.000000e+00> : vector<32xf32>
    %21 = vector.multi_reduction <add>, %20, %cst_8 [1] : vector<32x64xf32> to vector<32xf32>
    %22 = vector.shape_cast %21 : vector<32xf32> to vector<32x1xf32>
    %23 = tpu.reciprocal %22 : vector<32x1xf32> -> vector<32x1xf32>
    %24 = vector.broadcast %23 : vector<32x1xf32> to vector<32x64xf32>
    %25 = arith.mulf %20, %24 : vector<32x64xf32>
    %c0_9 = arith.constant 0 : index
    %c0_10 = arith.constant 0 : index
    %26 = vector.load %arg4[%c0_9, %c0_10] : memref<64x128xf32, #tpu.memory_space<vmem>>, vector<64x32xf32>
    %cst_11 = arith.constant dense<0.000000e+00> : vector<32x32xf32>
    %27 = tpu.matmul %25, %26, %cst_11 {dimension_numbers = #tpu.dot_dimension_numbers<[1], [0], [0], [1], [0, 0, 1, 1], [], []>} : vector<32x64xf32>, vector<64x32xf32>, vector<32x32xf32> -> vector<32x32xf32>
    %c0_12 = arith.constant 0 : index
    %c0_13 = arith.constant 0 : index
    %28 = vector.load %arg5[%c0_12, %c0_13] : memref<32x128xf32, #tpu.memory_space<vmem>>, vector<32x32xf32>
    tpu.vector_store %arg5[%c0_12, %c0_13], %27 {strides = array<i32>} : memref<32x128xf32, #tpu.memory_space<vmem>>, vector<32x32xf32>,
    %c0_14 = arith.constant 0 : index
    %c1 = arith.constant 1 : index
    %29 = vector.load %arg1[%c0_14, %c1] : memref<32x4xf32, #tpu.memory_space<vmem>>, vector<32x1xf32>
    %c1_15 = arith.constant 1 : index
    %c0_16 = arith.constant 0 : index
    %30 = vector.load %arg2[%c1_15, %c0_16] : memref<4x64xf32, #tpu.memory_space<vmem>>, vector<1x64xf32>
    %31 = vector.broadcast %29 : vector<32x1xf32> to vector<32x64xf32>
    %32 = vector.broadcast %30 : vector<1x64xf32> to vector<32x64xf32>
    %33 = arith.addf %31, %32 : vector<32x64xf32>
    %cst_17 = arith.constant 0.000000e+00 : f32
    %34 = vector.broadcast %cst_17 : f32 to vector<32x64xf32>
    %35 = arith.cmpf ogt, %33, %34 : vector<32x64xf32>
    %cst_18 = arith.constant 2.000000e-01 : f32
    %36 = vector.broadcast %cst_18 : f32 to vector<32x64xf32>
    %37 = arith.mulf %36, %33 : vector<32x64xf32>
    %38 = arith.select %35, %33, %37 : vector<32x64xi1>, vector<32x64xf32>
    %cst_19 = arith.constant -9.000000e+15 : f32
    %39 = vector.broadcast %cst_19 : f32 to vector<32x64xf32>
    %40 = arith.select %3, %38, %39 : vector<32x64xi1>, vector<32x64xf32>
    %cst_20 = arith.constant dense<0xFF800000> : vector<32xf32>
    %41 = vector.multi_reduction <maximumf>, %40, %cst_20 [1] : vector<32x64xf32> to vector<32xf32>
    %42 = vector.shape_cast %41 : vector<32xf32> to vector<32x1xf32>
    %43 = vector.broadcast %42 : vector<32x1xf32> to vector<32x64xf32>
    %44 = arith.subf %40, %43 : vector<32x64xf32>
    %45 = math.exp %44 : vector<32x64xf32>
    %cst_21 = arith.constant dense<0.000000e+00> : vector<32xf32>
    %46 = vector.multi_reduction <add>, %45, %cst_21 [1] : vector<32x64xf32> to vector<32xf32>
    %47 = vector.shape_cast %46 : vector<32xf32> to vector<32x1xf32>
    %48 = tpu.reciprocal %47 : vector<32x1xf32> -> vector<32x1xf32>
    %49 = vector.broadcast %48 : vector<32x1xf32> to vector<32x64xf32>
    %50 = arith.mulf %45, %49 : vector<32x64xf32>
    %c0_22 = arith.constant 0 : index
    %c32 = arith.constant 32 : index
    %51 = vector.load %arg4[%c0_22, %c32] : memref<64x128xf32, #tpu.memory_space<vmem>>, vector<64x32xf32>
    %cst_23 = arith.constant dense<0.000000e+00> : vector<32x32xf32>
    %52 = tpu.matmul %50, %51, %cst_23 {dimension_numbers = #tpu.dot_dimension_numbers<[1], [0], [0], [1], [0, 0, 1, 1], [], []>} : vector<32x64xf32>, vector<64x32xf32>, vector<32x32xf32> -> vector<32x32xf32>
    %c0_24 = arith.constant 0 : index
    %c32_25 = arith.constant 32 : index
    %53 = vector.load %arg5[%c0_24, %c32_25] : memref<32x128xf32, #tpu.memory_space<vmem>>, vector<32x32xf32>
    tpu.vector_store %arg5[%c0_24, %c32_25], %52 {strides = array<i32>} : memref<32x128xf32, #tpu.memory_space<vmem>>, vector<32x32xf32>,
    %c0_26 = arith.constant 0 : index
    %c2 = arith.constant 2 : index
    %54 = vector.load %arg1[%c0_26, %c2] : memref<32x4xf32, #tpu.memory_space<vmem>>, vector<32x1xf32>
    %c2_27 = arith.constant 2 : index
    %c0_28 = arith.constant 0 : index
    %55 = vector.load %arg2[%c2_27, %c0_28] : memref<4x64xf32, #tpu.memory_space<vmem>>, vector<1x64xf32>
    %56 = vector.broadcast %54 : vector<32x1xf32> to vector<32x64xf32>
    %57 = vector.broadcast %55 : vector<1x64xf32> to vector<32x64xf32>
    %58 = arith.addf %56, %57 : vector<32x64xf32>
    %cst_29 = arith.constant 0.000000e+00 : f32
    %59 = vector.broadcast %cst_29 : f32 to vector<32x64xf32>
    %60 = arith.cmpf ogt, %58, %59 : vector<32x64xf32>
    %cst_30 = arith.constant 2.000000e-01 : f32
    %61 = vector.broadcast %cst_30 : f32 to vector<32x64xf32>
    %62 = arith.mulf %61, %58 : vector<32x64xf32>
    %63 = arith.select %60, %58, %62 : vector<32x64xi1>, vector<32x64xf32>
    %cst_31 = arith.constant -9.000000e+15 : f32
    %64 = vector.broadcast %cst_31 : f32 to vector<32x64xf32>
    %65 = arith.select %3, %63, %64 : vector<32x64xi1>, vector<32x64xf32>
    %cst_32 = arith.constant dense<0xFF800000> : vector<32xf32>
    %66 = vector.multi_reduction <maximumf>, %65, %cst_32 [1] : vector<32x64xf32> to vector<32xf32>
    %67 = vector.shape_cast %66 : vector<32xf32> to vector<32x1xf32>
    %68 = vector.broadcast %67 : vector<32x1xf32> to vector<32x64xf32>
    %69 = arith.subf %65, %68 : vector<32x64xf32>
    %70 = math.exp %69 : vector<32x64xf32>
    %cst_33 = arith.constant dense<0.000000e+00> : vector<32xf32>
    %71 = vector.multi_reduction <add>, %70, %cst_33 [1] : vector<32x64xf32> to vector<32xf32>
    %72 = vector.shape_cast %71 : vector<32xf32> to vector<32x1xf32>
    %73 = tpu.reciprocal %72 : vector<32x1xf32> -> vector<32x1xf32>
    %74 = vector.broadcast %73 : vector<32x1xf32> to vector<32x64xf32>
    %75 = arith.mulf %70, %74 : vector<32x64xf32>
    %c0_34 = arith.constant 0 : index
    %c64 = arith.constant 64 : index
    %76 = vector.load %arg4[%c0_34, %c64] : memref<64x128xf32, #tpu.memory_space<vmem>>, vector<64x32xf32>
    %cst_35 = arith.constant dense<0.000000e+00> : vector<32x32xf32>
    %77 = tpu.matmul %75, %76, %cst_35 {dimension_numbers = #tpu.dot_dimension_numbers<[1], [0], [0], [1], [0, 0, 1, 1], [], []>} : vector<32x64xf32>, vector<64x32xf32>, vector<32x32xf32> -> vector<32x32xf32>
    %c0_36 = arith.constant 0 : index
    %c64_37 = arith.constant 64 : index
    %78 = vector.load %arg5[%c0_36, %c64_37] : memref<32x128xf32, #tpu.memory_space<vmem>>, vector<32x32xf32>
    tpu.vector_store %arg5[%c0_36, %c64_37], %77 {strides = array<i32>} : memref<32x128xf32, #tpu.memory_space<vmem>>, vector<32x32xf32>,
    %c0_38 = arith.constant 0 : index
    %c3 = arith.constant 3 : index
    %79 = vector.load %arg1[%c0_38, %c3] : memref<32x4xf32, #tpu.memory_space<vmem>>, vector<32x1xf32>
    %c3_39 = arith.constant 3 : index
    %c0_40 = arith.constant 0 : index
    %80 = vector.load %arg2[%c3_39, %c0_40] : memref<4x64xf32, #tpu.memory_space<vmem>>, vector<1x64xf32>
    %81 = vector.broadcast %79 : vector<32x1xf32> to vector<32x64xf32>
    %82 = vector.broadcast %80 : vector<1x64xf32> to vector<32x64xf32>
    %83 = arith.addf %81, %82 : vector<32x64xf32>
    %cst_41 = arith.constant 0.000000e+00 : f32
    %84 = vector.broadcast %cst_41 : f32 to vector<32x64xf32>
    %85 = arith.cmpf ogt, %83, %84 : vector<32x64xf32>
    %cst_42 = arith.constant 2.000000e-01 : f32
    %86 = vector.broadcast %cst_42 : f32 to vector<32x64xf32>
    %87 = arith.mulf %86, %83 : vector<32x64xf32>
    %88 = arith.select %85, %83, %87 : vector<32x64xi1>, vector<32x64xf32>
    %cst_43 = arith.constant -9.000000e+15 : f32
    %89 = vector.broadcast %cst_43 : f32 to vector<32x64xf32>
    %90 = arith.select %3, %88, %89 : vector<32x64xi1>, vector<32x64xf32>
    %cst_44 = arith.constant dense<0xFF800000> : vector<32xf32>
    %91 = vector.multi_reduction <maximumf>, %90, %cst_44 [1] : vector<32x64xf32> to vector<32xf32>
    %92 = vector.shape_cast %91 : vector<32xf32> to vector<32x1xf32>
    %93 = vector.broadcast %92 : vector<32x1xf32> to vector<32x64xf32>
    %94 = arith.subf %90, %93 : vector<32x64xf32>
    %95 = math.exp %94 : vector<32x64xf32>
    %cst_45 = arith.constant dense<0.000000e+00> : vector<32xf32>
    %96 = vector.multi_reduction <add>, %95, %cst_45 [1] : vector<32x64xf32> to vector<32xf32>
    %97 = vector.shape_cast %96 : vector<32xf32> to vector<32x1xf32>
    %98 = tpu.reciprocal %97 : vector<32x1xf32> -> vector<32x1xf32>
    %99 = vector.broadcast %98 : vector<32x1xf32> to vector<32x64xf32>
    %100 = arith.mulf %95, %99 : vector<32x64xf32>
    %c0_46 = arith.constant 0 : index
    %c96 = arith.constant 96 : index
    %101 = vector.load %arg4[%c0_46, %c96] : memref<64x128xf32, #tpu.memory_space<vmem>>, vector<64x32xf32>
    %cst_47 = arith.constant dense<0.000000e+00> : vector<32x32xf32>
    %102 = tpu.matmul %100, %101, %cst_47 {dimension_numbers = #tpu.dot_dimension_numbers<[1], [0], [0], [1], [0, 0, 1, 1], [], []>} : vector<32x64xf32>, vector<64x32xf32>, vector<32x32xf32> -> vector<32x32xf32>
    %c0_48 = arith.constant 0 : index
    %c96_49 = arith.constant 96 : index
    %103 = vector.load %arg5[%c0_48, %c96_49] : memref<32x128xf32, #tpu.memory_space<vmem>>, vector<32x32xf32>
    tpu.vector_store %arg5[%c0_48, %c96_49], %102 {strides = array<i32>} : memref<32x128xf32, #tpu.memory_space<vmem>>, vector<32x32xf32>,
    return
  }
  func.func @transform_0(%arg0: i32) -> (i32, i32) {
    %c0_i32 = arith.constant 0 : i32
    %c0_i32_0 = arith.constant 0 : i32
    return %arg0, %c0_i32 : i32, i32
  }
  func.func @transform_1(%arg0: i32) -> (i32, i32) {
    %c0_i32 = arith.constant 0 : i32
    %c0_i32_0 = arith.constant 0 : i32
    %c0_i32_1 = arith.constant 0 : i32
    return %c0_i32, %c0_i32_0 : i32, i32
  }
  func.func @transform_2(%arg0: i32) -> (i32, i32) {
    %c0_i32 = arith.constant 0 : i32
    %c0_i32_0 = arith.constant 0 : i32
    return %arg0, %c0_i32 : i32, i32
  }
  func.func @transform_3(%arg0: i32) -> (i32, i32) {
    %c0_i32 = arith.constant 0 : i32
    %c0_i32_0 = arith.constant 0 : i32
    %c0_i32_1 = arith.constant 0 : i32
    return %c0_i32, %c0_i32_0 : i32, i32
  }
  func.func @transform_4(%arg0: i32) -> (i32, i32) {
    %c0_i32 = arith.constant 0 : i32
    %c0_i32_0 = arith.constant 0 : i32
    return %arg0, %c0_i32 : i32, i32
  }
}

</mosaic_0001>

<llo_original>
// kernel: tpu_custom_call.1
$region0: #{tpu_custom_call.1}
  #allocation0 [shape = 'u32[]', space=smem, size = 0x4, offset = 0x4, fixed_abs, tag = 'smem constant byte address 0x4 - core index']
  #allocation1 [shape = 'u32[144,128]{1,0:T(1,128)}', space=vmem, size = 0x12000, scoped, tag = 'internal scratch']
  %s0 = inlined_call_operand.vmem [shape: f32[64,4], index: 0, kind: input, shape index: {}]
  %s1 = inlined_call_operand.vmem [shape: f32[4,64], index: 1, kind: input, shape index: {}]
  %s2 = inlined_call_operand.hbm [shape: s8[64,64], index: 2, kind: input, shape index: {}]
  %s3 = inlined_call_operand.vmem [shape: f32[64,128], index: 3, kind: input, shape index: {}]
  %s4 = inlined_call_operand.hbm [shape: f32[64,128], index: 4, kind: output, shape index: {}]
  %s5 = sld [smem:[#allocation0]]
  $region53: #{tpu_custom_call.1} parent=0
    _
  %s7 = ssub.s32 1, %s5
  %s8 = scalar_select 0, %s7, %s5
  $region1: #{tpu_custom_call.1} parent=0
    #allocation2 [shape = 'u8[8192]{0}', space=vmem, size = 0x2000, scoped, tag = 'input window, operand 2']
    #allocation3 [shape = 's32[2]{0}', space=sflag, size = 0x8, scoped, tag = 'scoped memory for tpu_custom_call.1']
    #allocation4 [shape = 's32[2]{0}', space=sflag, size = 0x8, scoped, tag = 'scoped memory for tpu_custom_call.1']
    #allocation5 [shape = 'u8[32768]{0}', space=vmem, size = 0x8000, scoped, tag = 'output window, operand 0']
    %9 = vsyncpa [#allocation3], 0
    %s10 = scalar_lea.sflag [#allocation3], 1
    %11 = vsyncpa %s10, 0
    %12 = vsyncpa [#allocation4], 0
    %s13 = scalar_lea.sflag [#allocation4], 1
    %14 = vsyncpa %s13, 0
    loop: start=0, step=1, limit=4
    $region2: #{tpu_custom_call.1} parent=1 // loop_pre_header
      _
    $region3: #{tpu_custom_call.1} parent=1 // loop_header
      %s16 = sphi 0, %s20
      %p17 = scmp.ge.s32.totalorder %s16, 4
      %s26 = sphi 0, %s28
      %s29 = sphi 0, %s26
      %s30 = sphi 0, %s29
      %s46 = sphi 0, %s30
      %s50 = sphi 0, %s50
      %s52 = sphi 0, %s50
      %s53 = sphi 0, %s52
      %s67 = sphi 0, %s53
      %s73 = sphi 0, %s75
      %s76 = sphi 0, %s73
      %s77 = sphi 0, %s76
      %s93 = sphi 0, %s77
      %s97 = sphi 0, %s97
      %s99 = sphi 0, %s97
      %s100 = sphi 0, %s99
      %s114 = sphi 0, %s100
      %s120 = sphi 0, %s122
      %s123 = sphi 0, %s120
      %s124 = sphi 0, %s123
      %s140 = sphi 0, %s124
    $region4: #{tpu_custom_call.1} parent=1 // loop_header_branch
      %19 = sbr.rel (%p17) target = $region8
    $region5: #{tpu_custom_call.1} parent=1 // loop_body
      %s21 = ssub.s32 %s16, 1
      %s22 = ssub.s32 %s16, 2
      %s23 = sadd.s32 %s16, 1
      %s24 = ssub.s32 %s16, %s23
      %p25 = scmp.eq.s32.totalorder %s24, 0
      %s27 = sadd.s32 %s26, 1
      %s28 = scalar_select %p25, %s26, %s27
      %p31 = pneg %p25
      %p32 = scmp.eq.s32.totalorder %s16, 1
      %p33 = por %p31, %p32
      %p34 = scmp.ne.s32.totalorder %s26, %s29
      %p35 = scmp.eq.s32.totalorder %s16, 0
      %p36 = por %p34, %p35
      %p37 = scmp.ne.s32.totalorder %s26, %s29
      %p38 = scmp.eq.s32.totalorder %s21, 1
      %p39 = por %p37, %p38
      %p40 = scmp.ne.s32.totalorder %s29, %s30
      %p41 = scmp.eq.s32.totalorder %s21, 0
      %p42 = por %p40, %p41
      %p43 = scmp.ne.s32.totalorder %s29, %s30
      %p44 = scmp.eq.s32.totalorder %s22, 1
      %p45 = por %p43, %p44
      %p47 = scmp.ne.s32.totalorder %s30, %s46
      %p48 = scmp.eq.s32.totalorder %s22, 0
      %p49 = por %p47, %p48
      %s51 = sadd.s32 %s50, 1
      %p54 = scmp.eq.s32.totalorder %s16, 1
      %p55 = scmp.ne.s32.totalorder %s50, %s52
      %p56 = scmp.eq.s32.totalorder %s16, 0
      %p57 = por %p55, %p56
      %p58 = scmp.ne.s32.totalorder %s50, %s52
      %p59 = scmp.eq.s32.totalorder %s21, 1
      %p60 = por %p58, %p59
      %p61 = scmp.ne.s32.totalorder %s52, %s53
      %p62 = scmp.eq.s32.totalorder %s21, 0
      %p63 = por %p61, %p62
      %p64 = scmp.ne.s32.totalorder %s52, %s53
      %p65 = scmp.eq.s32.totalorder %s22, 1
      %p66 = por %p64, %p65
      %p68 = scmp.ne.s32.totalorder %s53, %s67
      %p69 = scmp.eq.s32.totalorder %s22, 0
      %p70 = por %p68, %p69
      %s71 = ssub.s32 %s16, %s23
      %p72 = scmp.eq.s32.totalorder %s71, 0
      %s74 = sadd.s32 %s73, 1
      %s75 = scalar_select %p72, %s73, %s74
      %p78 = pneg %p72
      %p79 = scmp.eq.s32.totalorder %s16, 1
      %p80 = por %p78, %p79
      %p81 = scmp.ne.s32.totalorder %s73, %s76
      %p82 = scmp.eq.s32.totalorder %s16, 0
      %p83 = por %p81, %p82
      %p84 = scmp.ne.s32.totalorder %s73, %s76
      %p85 = scmp.eq.s32.totalorder %s21, 1
      %p86 = por %p84, %p85
      %p87 = scmp.ne.s32.totalorder %s76, %s77
      %p88 = scmp.eq.s32.totalorder %s21, 0
      %p89 = por %p87, %p88
      %p90 = scmp.ne.s32.totalorder %s76, %s77
      %p91 = scmp.eq.s32.totalorder %s22, 1
      %p92 = por %p90, %p91
      %p94 = scmp.ne.s32.totalorder %s77, %s93
      %p95 = scmp.eq.s32.totalorder %s22, 0
      %p96 = por %p94, %p95
      %s98 = sadd.s32 %s97, 1
      %p101 = scmp.eq.s32.totalorder %s16, 1
      %p102 = scmp.ne.s32.totalorder %s97, %s99
      %p103 = scmp.eq.s32.totalorder %s16, 0
      %p104 = por %p102, %p103
      %p105 = scmp.ne.s32.totalorder %s97, %s99
      %p106 = scmp.eq.s32.totalorder %s21, 1
      %p107 = por %p105, %p106
      %p108 = scmp.ne.s32.totalorder %s99, %s100
      %p109 = scmp.eq.s32.totalorder %s21, 0
      %p110 = por %p108, %p109
      %p111 = scmp.ne.s32.totalorder %s99, %s100
      %p112 = scmp.eq.s32.totalorder %s22, 1
      %p113 = por %p111, %p112
      %p115 = scmp.ne.s32.totalorder %s100, %s114
      %p116 = scmp.eq.s32.totalorder %s22, 0
      %p117 = por %p115, %p116
      %s118 = ssub.s32 %s16, %s23
      %p119 = scmp.eq.s32.totalorder %s118, 0
      %s121 = sadd.s32 %s120, 1
      %s122 = scalar_select %p119, %s120, %s121
      %p125 = pneg %p119
      %p126 = scmp.eq.s32.totalorder %s16, 1
      %p127 = por %p125, %p126
      %p128 = scmp.ne.s32.totalorder %s120, %s123
      %p129 = scmp.eq.s32.totalorder %s16, 0
      %p130 = por %p128, %p129
      %p131 = scmp.ne.s32.totalorder %s120, %s123
      %p132 = scmp.eq.s32.totalorder %s21, 1
      %p133 = por %p131, %p132
      %p134 = scmp.ne.s32.totalorder %s123, %s124
      %p135 = scmp.eq.s32.totalorder %s21, 0
      %p136 = por %p134, %p135
      %p137 = scmp.ne.s32.totalorder %s123, %s124
      %p138 = scmp.eq.s32.totalorder %s22, 1
      %p139 = por %p137, %p138
      %p141 = scmp.ne.s32.totalorder %s124, %s140
      %p142 = scmp.eq.s32.totalorder %s22, 0
      %p143 = por %p141, %p142
      %p144 = scmp.le.s32.totalorder 1, %s16
      %p145 = scmp.lt.s32.totalorder %s16, 3
      %p146 = pnand %p144, %p145
      %p147 = pneg %p146
      // Predicated region
      $region9: #{tpu_custom_call.1} parent=5 // pred_check
        _
      $region10: #{tpu_custom_call.1} parent=5 // pred_check_branch
        %149 = sbr.rel (%p146) target = $region12
      $region11: #{tpu_custom_call.1} parent=5 // pred_region
        %s150 = ssub.s32 %s16, 1
        // Predicated region
        $region13: #{tpu_custom_call.1} parent=11 // pred_check
          %p151 = pneg %p63
        $region14: #{tpu_custom_call.1} parent=11 // pred_check_branch
          %153 = sbr.rel (%p151) target = $region16
        $region15: #{tpu_custom_call.1} parent=11 // pred_region
          _
        $region16: #{tpu_custom_call.1} parent=11 // pred_fallthru
          _
        // Predicated region
        $region17: #{tpu_custom_call.1} parent=11 // pred_check
          %p154 = pneg %p110
        $region18: #{tpu_custom_call.1} parent=11 // pred_check_branch
          %156 = sbr.rel (%p154) target = $region20
        $region19: #{tpu_custom_call.1} parent=11 // pred_region
          _
        $region20: #{tpu_custom_call.1} parent=11 // pred_fallthru
          _
      $region12: #{tpu_custom_call.1} parent=5 // pred_fallthru
        _
      %p157 = scmp.lt.s32.totalorder %s16, 2
      // Predicated region
      $region21: #{tpu_custom_call.1} parent=5 // pred_check
        %p158 = pneg %p157
      $region22: #{tpu_custom_call.1} parent=5 // pred_check_branch
        %160 = sbr.rel (%p158) target = $region24
      $region23: #{tpu_custom_call.1} parent=5 // pred_region
        // Predicated region
        $region25: #{tpu_custom_call.1} parent=23 // pred_check
          %p161 = pneg %p36
        $region26: #{tpu_custom_call.1} parent=23 // pred_check_branch
          %163 = sbr.rel (%p161) target = $region28
        $region27: #{tpu_custom_call.1} parent=23 // pred_region
          %s164 = smul.u32 4, %s16
          %p165 = scmp.lt.s32.totalorder %s164, 7
          %s166 = scalar_select %p165, %s164, 7
          %s167 = smul.addr %s166, 8
          %s168 = scalar_lea.vmem %s0, %s167
          %s169 = smul.u32 4, %s16
        $region28: #{tpu_custom_call.1} parent=23 // pred_fallthru
          _
        // Predicated region
        $region29: #{tpu_custom_call.1} parent=23 // pred_check
          %p170 = pneg %p83
        $region30: #{tpu_custom_call.1} parent=23 // pred_check_branch
          %172 = sbr.rel (%p170) target = $region32
        $region31: #{tpu_custom_call.1} parent=23 // pred_region
          %s173 = sand.u32 %s73, 1
          %s174 = scalar_lea.sflag [#allocation3], %s173
          %s175 = sand.u32 %s73, 1
          %s176 = smul.addr %s175, 8
          %s177 = scalar_lea.vmem [#allocation2], %s176
          %s179 = ssub.s32 128, 128
          %180 = vsyncadd %s174, %s179
          %s181 = smul.addr %s16, 128
          %s182 = scalar_lea.hbm %s2, %s181
          %s184 = sshll.u32 %s177, 4
          %s185 = int_to_ptr.vmem [resolvable:$true] %s184
          %187 = dma.hbm_to_vmem [thread:$0]  %s182, 128, %s185, %s174
        $region32: #{tpu_custom_call.1} parent=23 // pred_fallthru
          _
      $region24: #{tpu_custom_call.1} parent=5 // pred_fallthru
        _
      %p188 = scmp.le.s32.totalorder 1, %s16
      %p189 = scmp.lt.s32.totalorder %s16, 3
      %p190 = pnand %p188, %p189
      %p191 = pneg %p190
      // Predicated region
      $region33: #{tpu_custom_call.1} parent=5 // pred_check
        _
      $region34: #{tpu_custom_call.1} parent=5 // pred_check_branch
        %193 = sbr.rel (%p190) target = $region36
      $region35: #{tpu_custom_call.1} parent=5 // pred_region
        %s194 = ssub.s32 %s16, 1
        %s195 = sand.u32 %s76, 1
        %s196 = scalar_lea.sflag [#allocation3], %s195
        %s197 = sand.u32 %s76, 1
        %s198 = smul.addr %s197, 8
        %s199 = scalar_lea.vmem [#allocation2], %s198
        // Predicated region
        $region37: #{tpu_custom_call.1} parent=35 // pred_check
          %p200 = pneg %p89
        $region38: #{tpu_custom_call.1} parent=35 // pred_check_branch
          %202 = sbr.rel (%p200) target = $region40
        $region39: #{tpu_custom_call.1} parent=35 // pred_region
          %203 = dma.done %s196, 128
        $region40: #{tpu_custom_call.1} parent=35 // pred_fallthru
          _
        %s204 = smul.u32 4, %s21
        %p205 = scmp.lt.s32.totalorder %s204, 7
        %s206 = scalar_select %p205, %s204, 7
        %s207 = smul.addr %s206, 8
        %s208 = scalar_lea.vmem %s0, %s207
        %p209 = pneg %p42
        %p210 = pneg %p39
        %p211 = pneg %p63
        %p212 = pneg %p60
        %s213 = sand.u32 %s76, 1
        %s214 = scalar_lea.sflag [#allocation3], %s213
        %s215 = sand.u32 %s76, 1
        %s216 = smul.addr %s215, 8
        %s217 = scalar_lea.vmem [#allocation2], %s216
        %p218 = pneg %p89
        %p219 = pneg %p86
        %p220 = pneg %p110
        %p221 = pneg %p107
        %p222 = pneg %p136
        %p223 = pneg %p133
        %s224 = sand.u32 %s123, 1
        %s225 = scalar_lea.sflag [#allocation4], %s224
        %s226 = sand.u32 %s123, 1
        %s227 = smul.addr %s226, 32
        %s228 = scalar_lea.vmem [#allocation5], %s227
        %s229 = smul.u32 4, %s21
        %p230 = scmp.lt.s32.totalorder %s229, 7
        %s231 = scalar_select %p230, %s229, 7
        %s232 = smul.addr %s231, 8
        %s233 = scalar_lea.vmem %s0, %s232
        %s234 = smul.u32 4, %s21
        %s235 = smul.u32 4, %s21
        %v236 = vld [vmem:[%s199] sm:$0xff]
        %v237 = vunpack.c.0.s8 %v236
        %v238 = vunpack.c.1.s8 %v236
        %v239 = vunpack.c.2.s8 %v236
        %v240 = vunpack.c.3.s8 %v236
        %vm241 = vcmp.gt.s32.totalorder %v237, 0
        %vm242 = vcmp.gt.s32.totalorder %v238, 0
        %vm243 = vcmp.gt.s32.totalorder %v239, 0
        %vm244 = vcmp.gt.s32.totalorder %v240, 0
        %v245 = vld [vmem:[%s233] sm:$0xff]
        %v246 = vld [vmem:[%s233 + $0x8] sm:$0xff]
        %v247 = vld [vmem:[%s233 + $0x10] sm:$0xff]
        %v248 = vld [vmem:[%s233 + $0x18] sm:$0xff]
        %v249 = vld [vmem:[%s1] sm:$0x1]
        %251 = vset.pattern.permute.xlu0 0
        %252 = vperm.xlu0 %251, %v245
        %v253 = vpop.permute.xlu0 %252
        %256 = vset.pattern.permute.xlu0 0
        %257 = vperm.xlu0 %256, %v246
        %v258 = vpop.permute.xlu0 %257
        %261 = vset.pattern.permute.xlu0 0
        %262 = vperm.xlu0 %261, %v247
        %v263 = vpop.permute.xlu0 %262
        %266 = vset.pattern.permute.xlu0 0
        %267 = vperm.xlu0 %266, %v248
        %v268 = vpop.permute.xlu0 %267
        %v270 = vlaneseq
        %v271 = vshrl.u32 %v270, 7
        %v272 = vsub.s32 0, %v271
        %v273 = vrot.slane %v249, %v272
        %v274 = vadd.f32 %v253, %v273
        %v275 = vadd.f32 %v258, %v273
        %v276 = vadd.f32 %v263, %v273
        %v277 = vadd.f32 %v268, %v273
        %vm278 = vcmp.gt.f32.partialorder %v274, 0.0
        %vm279 = vcmp.gt.f32.partialorder %v275, 0.0
        %vm280 = vcmp.gt.f32.partialorder %v276, 0.0
        %vm281 = vcmp.gt.f32.partialorder %v277, 0.0
        %v282 = vmul.f32 %v274, 0.2
        %v283 = vmul.f32 %v275, 0.2
        %v284 = vmul.f32 %v276, 0.2
        %v285 = vmul.f32 %v277, 0.2
        %v286 = vsel %vm278, %v274, %v282
        %v287 = vsel %vm279, %v275, %v283
        %v288 = vsel %vm280, %v276, %v284
        %v289 = vsel %vm281, %v277, %v285
        %v290 = vsel %vm241, %v286, -9e+15
        %v291 = vsel %vm242, %v287, -9e+15
        %v292 = vsel %vm243, %v288, -9e+15
        %v293 = vsel %vm244, %v289, -9e+15
        %vm294 = vcmask 523264
        %v295 = vsel %vm294, %v290, -inf
        %296 = vmax.xlane.f32.xlu0 %v295
        %v297 = vpop.xlane.xlu0 %296
        %v298 = vsel %vm294, %v291, -inf
        %299 = vmax.xlane.f32.xlu0 %v298
        %v300 = vpop.xlane.xlu0 %299
        %v301 = vsel %vm294, %v292, -inf
        %302 = vmax.xlane.f32.xlu0 %v301
        %v303 = vpop.xlane.xlu0 %302
        %v304 = vsel %vm294, %v293, -inf
        %305 = vmax.xlane.f32.xlu0 %v304
        %v306 = vpop.xlane.xlu0 %305
        %v307 = vsub.f32 %v290, %v297
        %v308 = vsub.f32 %v291, %v300
        %v309 = vsub.f32 %v292, %v303
        %v310 = vsub.f32 %v293, %v306
        %v311 = vmul.f32 %v307, 1.442695
        %v312 = vpow.pop %v311
        %v313 = vmul.f32 %v308, 1.442695
        %v314 = vpow.pop %v313
        %v315 = vmul.f32 %v309, 1.442695
        %v316 = vpow.pop %v315
        %v317 = vmul.f32 %v310, 1.442695
        %v318 = vpow.pop %v317
        %v319 = vsel %vm294, %v312, 0.0
        %320 = vadd.xlane.f32.xlu0 %v319
        %v321 = vpop.xlane.xlu0 %320
        %v322 = vsel %vm294, %v314, 0.0
        %323 = vadd.xlane.f32.xlu0 %v322
        %v324 = vpop.xlane.xlu0 %323
        %v325 = vsel %vm294, %v316, 0.0
        %326 = vadd.xlane.f32.xlu0 %v325
        %v327 = vpop.xlane.xlu0 %326
        %v328 = vsel %vm294, %v318, 0.0
        %329 = vadd.xlane.f32.xlu0 %v328
        %v330 = vpop.xlane.xlu0 %329
        %v331 = vrcp.pop %v321
        %v332 = vrcp.pop %v324
        %v333 = vrcp.pop %v327
        %v334 = vrcp.pop %v330
        %v335 = vmul.f32 %v312, %v331
        %v336 = vmul.f32 %v314, %v332
        %v337 = vmul.f32 %v316, %v333
        %v338 = vmul.f32 %v318, %v334
        %v339 = vld [vmem:[%s3] sm:$0xff]
        %v340 = vld [vmem:[%s3 + $0x8] sm:$0xff]
        %v341 = vld [vmem:[%s3 + $0x10] sm:$0xff]
        %v342 = vld [vmem:[%s3 + $0x18] sm:$0xff]
        %v343 = vld [vmem:[%s3 + $0x20] sm:$0xff]
        %v344 = vld [vmem:[%s3 + $0x28] sm:$0xff]
        %v345 = vld [vmem:[%s3 + $0x30] sm:$0xff]
        %v346 = vld [vmem:[%s3 + $0x38] sm:$0xff]
        %v348 = vsel %vm294, %v335, 0
        %v351 = vsel %vm294, %v336, 0
        %v354 = vsel %vm294, %v337, 0
        %v357 = vsel %vm294, %v338, 0
        %359 = vmatprep.subr.mxu0 0.0
        %360 = vmatpush1.msra.mxu0 %v339
        %361 = vmatprep.subr.mxu0 0.0
        %362 = vmatpush1.msra.mxu0 %v340
        %363 = vmatprep.subr.mxu0 0.0
        %364 = vmatpush1.msra.mxu0 %v341
        %365 = vmatprep.subr.mxu0 0.0
        %366 = vmatpush1.msra.mxu0 %v342
        %367 = vmatprep.subr.mxu0 0.0
        %368 = vmatpush1.msra.mxu0 %v343
        %369 = vmatprep.subr.mxu0 0.0
        %370 = vmatpush1.msra.mxu0 %v344
        %371 = vmatprep.subr.mxu0 0.0
        %372 = vmatpush1.msra.mxu0 %v345
        %373 = vmatprep.subr.mxu0 0.0
        %374 = vmatpush1.msra.mxu0 %v346
        %375 = vmatprep.subr.mxu0 0.0
        %376 = vmatpush1.msra.mxu0 0.0
        %377 = vmatprep.subr.mxu0 0.0
        %378 = vmatpush1.msra.mxu0 0.0
        %379 = vmatprep.subr.mxu0 0.0
        %380 = vmatpush1.msra.mxu0 0.0
        %381 = vmatprep.subr.mxu0 0.0
        %382 = vmatpush1.msra.mxu0 0.0
        %383 = vmatprep.subr.mxu0 0.0
        %384 = vmatpush1.msra.mxu0 0.0
        %385 = vmatprep.subr.mxu0 0.0
        %386 = vmatpush1.msra.mxu0 0.0
        %387 = vmatprep.subr.mxu0 0.0
        %388 = vmatpush1.msra.mxu0 0.0
        %389 = vmatprep.subr.mxu0 0.0
        %390 = vmatpush1.msra.mxu0 0.0
        %391 = vmatprep.subr.mxu0 0.0
        %392 = vmatpush1.msra.mxu0 0.0
        %393 = vmatprep.subr.mxu0 0.0
        %394 = vmatpush1.msra.mxu0 0.0
        %395 = vmatprep.subr.mxu0 0.0
        %396 = vmatpush1.msra.mxu0 0.0
        %397 = vmatprep.subr.mxu0 0.0
        %398 = vmatpush1.msra.mxu0 0.0
        %399 = vmatprep.subr.mxu0 0.0
        %400 = vmatpush1.msra.mxu0 0.0
        %401 = vmatprep.subr.mxu0 0.0
        %402 = vmatpush1.msra.mxu0 0.0
        %403 = vmatprep.subr.mxu0 0.0
        %404 = vmatpush1.msra.mxu0 0.0
        %405 = vmatprep.subr.mxu0 0.0
        %406 = vmatpush1.msra.mxu0 0.0
        %407 = vmatprep.subr.mxu0 0.0
        %408 = vmatpush1.msra.mxu0 0.0
        %409 = vmatprep.subr.mxu0 0.0
        %410 = vmatpush1.msra.mxu0 0.0
        %411 = vmatprep.subr.mxu0 0.0
        %412 = vmatpush1.msra.mxu0 0.0
        %413 = vmatprep.subr.mxu0 0.0
        %414 = vmatpush1.msra.mxu0 0.0
        %415 = vmatprep.subr.mxu0 0.0
        %416 = vmatpush1.msra.mxu0 0.0
        %417 = vmatprep.subr.mxu0 0.0
        %418 = vmatpush1.msra.mxu0 0.0
        %419 = vmatprep.subr.mxu0 0.0
        %420 = vmatpush1.msra.mxu0 0.0
        %421 = vmatprep.subr.mxu0 0.0
        %422 = vmatpush1.msra.mxu0 0.0
        %423 = vmatprep.mubr.f32.mxu0 0.0
        %424 = vmatmul.mubr.f32.gmra.mrb[0].mxu0 %v348
        %v425 = vpop.f32.mrb[0].mxu0
        %v426 = vadd.f32 0.0, %v425
        %v427 = vpop.f32.mrb[0].mxu0
        %428 = vmatprep.mubr.f32.mxu0 0.0
        %429 = vmatmul.mubr.f32.gmra.mrb[0].mxu0 %v351
        %v430 = vpop.f32.mrb[0].mxu0
        %v431 = vadd.f32 0.0, %v430
        %v432 = vpop.f32.mrb[0].mxu0
        %433 = vmatprep.mubr.f32.mxu0 0.0
        %434 = vmatmul.mubr.f32.gmra.mrb[0].mxu0 %v354
        %v435 = vpop.f32.mrb[0].mxu0
        %v436 = vadd.f32 0.0, %v435
        %v437 = vpop.f32.mrb[0].mxu0
        %438 = vmatprep.mubr.f32.mxu0 0.0
        %439 = vmatmul.mubr.f32.gmra.mrb[0].mxu0 %v357
        %v440 = vpop.f32.mrb[0].mxu0
        %v441 = vadd.f32 0.0, %v440
        %v442 = vpop.f32.mrb[0].mxu0
        %443 = vdwg.mxu0
        %vm444 = vcmask 261120
        %445 = vst.msk [vmem:[%s228] sm:$0xff] %vm444, %v426
        %446 = vst.msk [vmem:[%s228 + $0x8] sm:$0xff] %vm444, %v431
        %447 = vst.msk [vmem:[%s228 + $0x10] sm:$0xff] %vm444, %v436
        %448 = vst.msk [vmem:[%s228 + $0x18] sm:$0xff] %vm444, %v441
        %v449 = vld [vmem:[%s233] sm:$0xff]
        %v450 = vld [vmem:[%s233 + $0x8] sm:$0xff]
        %v451 = vld [vmem:[%s233 + $0x10] sm:$0xff]
        %v452 = vld [vmem:[%s233 + $0x18] sm:$0xff]
        %v453 = vld [vmem:[%s1 + $0x1] sm:$0x1]
        %455 = vset.pattern.permute.xlu0 1
        %456 = vperm.xlu0 %455, %v449
        %v457 = vpop.permute.xlu0 %456
        %460 = vset.pattern.permute.xlu0 1
        %461 = vperm.xlu0 %460, %v450
        %v462 = vpop.permute.xlu0 %461
        %465 = vset.pattern.permute.xlu0 1
        %466 = vperm.xlu0 %465, %v451
        %v467 = vpop.permute.xlu0 %466
        %470 = vset.pattern.permute.xlu0 1
        %471 = vperm.xlu0 %470, %v452
        %v472 = vpop.permute.xlu0 %471
        %v474 = vlaneseq
        %v475 = vshrl.u32 %v474, 7
        %v476 = vsub.s32 0, %v475
        %v477 = vrot.slane %v453, %v476
        %v478 = vadd.f32 %v457, %v477
        %v479 = vadd.f32 %v462, %v477
        %v480 = vadd.f32 %v467, %v477
        %v481 = vadd.f32 %v472, %v477
        %vm482 = vcmp.gt.f32.partialorder %v478, 0.0
        %vm483 = vcmp.gt.f32.partialorder %v479, 0.0
        %vm484 = vcmp.gt.f32.partialorder %v480, 0.0
        %vm485 = vcmp.gt.f32.partialorder %v481, 0.0
        %v486 = vmul.f32 %v478, 0.2
        %v487 = vmul.f32 %v479, 0.2
        %v488 = vmul.f32 %v480, 0.2
        %v489 = vmul.f32 %v481, 0.2
        %v490 = vsel %vm482, %v478, %v486
        %v491 = vsel %vm483, %v479, %v487
        %v492 = vsel %vm484, %v480, %v488
        %v493 = vsel %vm485, %v481, %v489
        %v494 = vsel %vm241, %v490, -9e+15
        %v495 = vsel %vm242, %v491, -9e+15
        %v496 = vsel %vm243, %v492, -9e+15
        %v497 = vsel %vm244, %v493, -9e+15
        %v498 = vsel %vm294, %v494, -inf
        %499 = vmax.xlane.f32.xlu0 %v498
        %v500 = vpop.xlane.xlu0 %499
        %v501 = vsel %vm294, %v495, -inf
        %502 = vmax.xlane.f32.xlu0 %v501
        %v503 = vpop.xlane.xlu0 %502
        %v504 = vsel %vm294, %v496, -inf
        %505 = vmax.xlane.f32.xlu0 %v504
        %v506 = vpop.xlane.xlu0 %505
        %v507 = vsel %vm294, %v497, -inf
        %508 = vmax.xlane.f32.xlu0 %v507
        %v509 = vpop.xlane.xlu0 %508
        %v510 = vsub.f32 %v494, %v500
        %v511 = vsub.f32 %v495, %v503
        %v512 = vsub.f32 %v496, %v506
        %v513 = vsub.f32 %v497, %v509
        %v514 = vmul.f32 %v510, 1.442695
        %v515 = vpow.pop %v514
        %v516 = vmul.f32 %v511, 1.442695
        %v517 = vpow.pop %v516
        %v518 = vmul.f32 %v512, 1.442695
        %v519 = vpow.pop %v518
        %v520 = vmul.f32 %v513, 1.442695
        %v521 = vpow.pop %v520
        %v522 = vsel %vm294, %v515, 0.0
        %523 = vadd.xlane.f32.xlu0 %v522
        %v524 = vpop.xlane.xlu0 %523
        %v525 = vsel %vm294, %v517, 0.0
        %526 = vadd.xlane.f32.xlu0 %v525
        %v527 = vpop.xlane.xlu0 %526
        %v528 = vsel %vm294, %v519, 0.0
        %529 = vadd.xlane.f32.xlu0 %v528
        %v530 = vpop.xlane.xlu0 %529
        %v531 = vsel %vm294, %v521, 0.0
        %532 = vadd.xlane.f32.xlu0 %v531
        %v533 = vpop.xlane.xlu0 %532
        %v534 = vrcp.pop %v524
        %v535 = vrcp.pop %v527
        %v536 = vrcp.pop %v530
        %v537 = vrcp.pop %v533
        %v538 = vmul.f32 %v515, %v534
        %v539 = vmul.f32 %v517, %v535
        %v540 = vmul.f32 %v519, %v536
        %v541 = vmul.f32 %v521, %v537
        %v542 = vld [vmem:[%s3] sm:$0xff]
        %v543 = vld [vmem:[%s3 + $0x8] sm:$0xff]
        %v544 = vld [vmem:[%s3 + $0x10] sm:$0xff]
        %v545 = vld [vmem:[%s3 + $0x18] sm:$0xff]
        %v546 = vld [vmem:[%s3 + $0x20] sm:$0xff]
        %v547 = vld [vmem:[%s3 + $0x28] sm:$0xff]
        %v548 = vld [vmem:[%s3 + $0x30] sm:$0xff]
        %v549 = vld [vmem:[%s3 + $0x38] sm:$0xff]
        %558 = vrot.lane.b32.xlu0 %v542, 96
        %v559 = vpop.permute.xlu0 %558
        %560 = vrot.lane.b32.xlu0 %v543, 96
        %v561 = vpop.permute.xlu0 %560
        %562 = vrot.lane.b32.xlu0 %v544, 96
        %v563 = vpop.permute.xlu0 %562
        %564 = vrot.lane.b32.xlu0 %v545, 96
        %v565 = vpop.permute.xlu0 %564
        %566 = vrot.lane.b32.xlu0 %v546, 96
        %v567 = vpop.permute.xlu0 %566
        %568 = vrot.lane.b32.xlu0 %v547, 96
        %v569 = vpop.permute.xlu0 %568
        %570 = vrot.lane.b32.xlu0 %v548, 96
        %v571 = vpop.permute.xlu0 %570
        %572 = vrot.lane.b32.xlu0 %v549, 96
        %v573 = vpop.permute.xlu0 %572
        %v583 = vsel %vm294, %v538, 0
        %v586 = vsel %vm294, %v539, 0
        %v589 = vsel %vm294, %v540, 0
        %v592 = vsel %vm294, %v541, 0
        %594 = vmatprep.subr.mxu0 0.0
        %595 = vmatpush1.msra.mxu0 %v559
        %596 = vmatprep.subr.mxu0 0.0
        %597 = vmatpush1.msra.mxu0 %v561
        %598 = vmatprep.subr.mxu0 0.0
        %599 = vmatpush1.msra.mxu0 %v563
        %600 = vmatprep.subr.mxu0 0.0
        %601 = vmatpush1.msra.mxu0 %v565
        %602 = vmatprep.subr.mxu0 0.0
        %603 = vmatpush1.msra.mxu0 %v567
        %604 = vmatprep.subr.mxu0 0.0
        %605 = vmatpush1.msra.mxu0 %v569
        %606 = vmatprep.subr.mxu0 0.0
        %607 = vmatpush1.msra.mxu0 %v571
        %608 = vmatprep.subr.mxu0 0.0
        %609 = vmatpush1.msra.mxu0 %v573
        %610 = vmatprep.subr.mxu0 0.0
        %611 = vmatpush1.msra.mxu0 0.0
        %612 = vmatprep.subr.mxu0 0.0
        %613 = vmatpush1.msra.mxu0 0.0
        %614 = vmatprep.subr.mxu0 0.0
        %615 = vmatpush1.msra.mxu0 0.0
        %616 = vmatprep.subr.mxu0 0.0
        %617 = vmatpush1.msra.mxu0 0.0
        %618 = vmatprep.subr.mxu0 0.0
        %619 = vmatpush1.msra.mxu0 0.0
        %620 = vmatprep.subr.mxu0 0.0
        %621 = vmatpush1.msra.mxu0 0.0
        %622 = vmatprep.subr.mxu0 0.0
        %623 = vmatpush1.msra.mxu0 0.0
        %624 = vmatprep.subr.mxu0 0.0
        %625 = vmatpush1.msra.mxu0 0.0
        %626 = vmatprep.subr.mxu0 0.0
        %627 = vmatpush1.msra.mxu0 0.0
        %628 = vmatprep.subr.mxu0 0.0
        %629 = vmatpush1.msra.mxu0 0.0
        %630 = vmatprep.subr.mxu0 0.0
        %631 = vmatpush1.msra.mxu0 0.0
        %632 = vmatprep.subr.mxu0 0.0
        %633 = vmatpush1.msra.mxu0 0.0
        %634 = vmatprep.subr.mxu0 0.0
        %635 = vmatpush1.msra.mxu0 0.0
        %636 = vmatprep.subr.mxu0 0.0
        %637 = vmatpush1.msra.mxu0 0.0
        %638 = vmatprep.subr.mxu0 0.0
        %639 = vmatpush1.msra.mxu0 0.0
        %640 = vmatprep.subr.mxu0 0.0
        %641 = vmatpush1.msra.mxu0 0.0
        %642 = vmatprep.subr.mxu0 0.0
        %643 = vmatpush1.msra.mxu0 0.0
        %644 = vmatprep.subr.mxu0 0.0
        %645 = vmatpush1.msra.mxu0 0.0
        %646 = vmatprep.subr.mxu0 0.0
        %647 = vmatpush1.msra.mxu0 0.0
        %648 = vmatprep.subr.mxu0 0.0
        %649 = vmatpush1.msra.mxu0 0.0
        %650 = vmatprep.subr.mxu0 0.0
        %651 = vmatpush1.msra.mxu0 0.0
        %652 = vmatprep.subr.mxu0 0.0
        %653 = vmatpush1.msra.mxu0 0.0
        %654 = vmatprep.subr.mxu0 0.0
        %655 = vmatpush1.msra.mxu0 0.0
        %656 = vmatprep.subr.mxu0 0.0
        %657 = vmatpush1.msra.mxu0 0.0
        %658 = vmatprep.mubr.f32.mxu0 0.0
        %659 = vmatmul.mubr.f32.gmra.mrb[0].mxu0 %v583
        %v660 = vpop.f32.mrb[0].mxu0
        %v661 = vadd.f32 0.0, %v660
        %v662 = vpop.f32.mrb[0].mxu0
        %663 = vmatprep.mubr.f32.mxu0 0.0
        %664 = vmatmul.mubr.f32.gmra.mrb[0].mxu0 %v586
        %v665 = vpop.f32.mrb[0].mxu0
        %v666 = vadd.f32 0.0, %v665
        %v667 = vpop.f32.mrb[0].mxu0
        %668 = vmatprep.mubr.f32.mxu0 0.0
        %669 = vmatmul.mubr.f32.gmra.mrb[0].mxu0 %v589
        %v670 = vpop.f32.mrb[0].mxu0
        %v671 = vadd.f32 0.0, %v670
        %v672 = vpop.f32.mrb[0].mxu0
        %673 = vmatprep.mubr.f32.mxu0 0.0
        %674 = vmatmul.mubr.f32.gmra.mrb[0].mxu0 %v592
        %v675 = vpop.f32.mrb[0].mxu0
        %v676 = vadd.f32 0.0, %v675
        %v677 = vpop.f32.mrb[0].mxu0
        %678 = vdwg.mxu0
        %683 = vrot.lane.b32.xlu0 %v661, 32
        %v684 = vpop.permute.xlu0 %683
        %685 = vrot.lane.b32.xlu0 %v666, 32
        %v686 = vpop.permute.xlu0 %685
        %687 = vrot.lane.b32.xlu0 %v671, 32
        %v688 = vpop.permute.xlu0 %687
        %689 = vrot.lane.b32.xlu0 %v676, 32
        %v690 = vpop.permute.xlu0 %689
        %vm695 = vcmask 523520
        %696 = vst.msk [vmem:[%s228] sm:$0xff] %vm695, %v684
        %697 = vst.msk [vmem:[%s228 + $0x8] sm:$0xff] %vm695, %v686
        %698 = vst.msk [vmem:[%s228 + $0x10] sm:$0xff] %vm695, %v688
        %699 = vst.msk [vmem:[%s228 + $0x18] sm:$0xff] %vm695, %v690
        %v700 = vld [vmem:[%s233] sm:$0xff]
        %v701 = vld [vmem:[%s233 + $0x8] sm:$0xff]
        %v702 = vld [vmem:[%s233 + $0x10] sm:$0xff]
        %v703 = vld [vmem:[%s233 + $0x18] sm:$0xff]
        %v704 = vld [vmem:[%s1 + $0x2] sm:$0x1]
        %706 = vset.pattern.permute.xlu0 2
        %707 = vperm.xlu0 %706, %v700
        %v708 = vpop.permute.xlu0 %707
        %711 = vset.pattern.permute.xlu0 2
        %712 = vperm.xlu0 %711, %v701
        %v713 = vpop.permute.xlu0 %712
        %716 = vset.pattern.permute.xlu0 2
        %717 = vperm.xlu0 %716, %v702
        %v718 = vpop.permute.xlu0 %717
        %721 = vset.pattern.permute.xlu0 2
        %722 = vperm.xlu0 %721, %v703
        %v723 = vpop.permute.xlu0 %722
        %v725 = vlaneseq
        %v726 = vshrl.u32 %v725, 7
        %v727 = vsub.s32 0, %v726
        %v728 = vrot.slane %v704, %v727
        %v729 = vadd.f32 %v708, %v728
        %v730 = vadd.f32 %v713, %v728
        %v731 = vadd.f32 %v718, %v728
        %v732 = vadd.f32 %v723, %v728
        %vm733 = vcmp.gt.f32.partialorder %v729, 0.0
        %vm734 = vcmp.gt.f32.partialorder %v730, 0.0
        %vm735 = vcmp.gt.f32.partialorder %v731, 0.0
        %vm736 = vcmp.gt.f32.partialorder %v732, 0.0
        %v737 = vmul.f32 %v729, 0.2
        %v738 = vmul.f32 %v730, 0.2
        %v739 = vmul.f32 %v731, 0.2
        %v740 = vmul.f32 %v732, 0.2
        %v741 = vsel %vm733, %v729, %v737
        %v742 = vsel %vm734, %v730, %v738
        %v743 = vsel %vm735, %v731, %v739
        %v744 = vsel %vm736, %v732, %v740
        %v745 = vsel %vm241, %v741, -9e+15
        %v746 = vsel %vm242, %v742, -9e+15
        %v747 = vsel %vm243, %v743, -9e+15
        %v748 = vsel %vm244, %v744, -9e+15
        %v749 = vsel %vm294, %v745, -inf
        %750 = vmax.xlane.f32.xlu0 %v749
        %v751 = vpop.xlane.xlu0 %750
        %v752 = vsel %vm294, %v746, -inf
        %753 = vmax.xlane.f32.xlu0 %v752
        %v754 = vpop.xlane.xlu0 %753
        %v755 = vsel %vm294, %v747, -inf
        %756 = vmax.xlane.f32.xlu0 %v755
        %v757 = vpop.xlane.xlu0 %756
        %v758 = vsel %vm294, %v748, -inf
        %759 = vmax.xlane.f32.xlu0 %v758
        %v760 = vpop.xlane.xlu0 %759
        %v761 = vsub.f32 %v745, %v751
        %v762 = vsub.f32 %v746, %v754
        %v763 = vsub.f32 %v747, %v757
        %v764 = vsub.f32 %v748, %v760
        %v765 = vmul.f32 %v761, 1.442695
        %v766 = vpow.pop %v765
        %v767 = vmul.f32 %v762, 1.442695
        %v768 = vpow.pop %v767
        %v769 = vmul.f32 %v763, 1.442695
        %v770 = vpow.pop %v769
        %v771 = vmul.f32 %v764, 1.442695
        %v772 = vpow.pop %v771
        %v773 = vsel %vm294, %v766, 0.0
        %774 = vadd.xlane.f32.xlu0 %v773
        %v775 = vpop.xlane.xlu0 %774
        %v776 = vsel %vm294, %v768, 0.0
        %777 = vadd.xlane.f32.xlu0 %v776
        %v778 = vpop.xlane.xlu0 %777
        %v779 = vsel %vm294, %v770, 0.0
        %780 = vadd.xlane.f32.xlu0 %v779
        %v781 = vpop.xlane.xlu0 %780
        %v782 = vsel %vm294, %v772, 0.0
        %783 = vadd.xlane.f32.xlu0 %v782
        %v784 = vpop.xlane.xlu0 %783
        %v785 = vrcp.pop %v775
        %v786 = vrcp.pop %v778
        %v787 = vrcp.pop %v781
        %v788 = vrcp.pop %v784
        %v789 = vmul.f32 %v766, %v785
        %v790 = vmul.f32 %v768, %v786
        %v791 = vmul.f32 %v770, %v787
        %v792 = vmul.f32 %v772, %v788
        %v793 = vld [vmem:[%s3] sm:$0xff]
        %v794 = vld [vmem:[%s3 + $0x8] sm:$0xff]
        %v795 = vld [vmem:[%s3 + $0x10] sm:$0xff]
        %v796 = vld [vmem:[%s3 + $0x18] sm:$0xff]
        %v797 = vld [vmem:[%s3 + $0x20] sm:$0xff]
        %v798 = vld [vmem:[%s3 + $0x28] sm:$0xff]
        %v799 = vld [vmem:[%s3 + $0x30] sm:$0xff]
        %v800 = vld [vmem:[%s3 + $0x38] sm:$0xff]
        %809 = vrot.lane.b32.xlu0 %v793, 64
        %v810 = vpop.permute.xlu0 %809
        %811 = vrot.lane.b32.xlu0 %v794, 64
        %v812 = vpop.permute.xlu0 %811
        %813 = vrot.lane.b32.xlu0 %v795, 64
        %v814 = vpop.permute.xlu0 %813
        %815 = vrot.lane.b32.xlu0 %v796, 64
        %v816 = vpop.permute.xlu0 %815
        %817 = vrot.lane.b32.xlu0 %v797, 64
        %v818 = vpop.permute.xlu0 %817
        %819 = vrot.lane.b32.xlu0 %v798, 64
        %v820 = vpop.permute.xlu0 %819
        %821 = vrot.lane.b32.xlu0 %v799, 64
        %v822 = vpop.permute.xlu0 %821
        %823 = vrot.lane.b32.xlu0 %v800, 64
        %v824 = vpop.permute.xlu0 %823
        %v834 = vsel %vm294, %v789, 0
        %v837 = vsel %vm294, %v790, 0
        %v840 = vsel %vm294, %v791, 0
        %v843 = vsel %vm294, %v792, 0
        %845 = vmatprep.subr.mxu0 0.0
        %846 = vmatpush1.msra.mxu0 %v810
        %847 = vmatprep.subr.mxu0 0.0
        %848 = vmatpush1.msra.mxu0 %v812
        %849 = vmatprep.subr.mxu0 0.0
        %850 = vmatpush1.msra.mxu0 %v814
        %851 = vmatprep.subr.mxu0 0.0
        %852 = vmatpush1.msra.mxu0 %v816
        %853 = vmatprep.subr.mxu0 0.0
        %854 = vmatpush1.msra.mxu0 %v818
        %855 = vmatprep.subr.mxu0 0.0
        %856 = vmatpush1.msra.mxu0 %v820
        %857 = vmatprep.subr.mxu0 0.0
        %858 = vmatpush1.msra.mxu0 %v822
        %859 = vmatprep.subr.mxu0 0.0
        %860 = vmatpush1.msra.mxu0 %v824
        %861 = vmatprep.subr.mxu0 0.0
        %862 = vmatpush1.msra.mxu0 0.0
        %863 = vmatprep.subr.mxu0 0.0
        %864 = vmatpush1.msra.mxu0 0.0
        %865 = vmatprep.subr.mxu0 0.0
        %866 = vmatpush1.msra.mxu0 0.0
        %867 = vmatprep.subr.mxu0 0.0
        %868 = vmatpush1.msra.mxu0 0.0
        %869 = vmatprep.subr.mxu0 0.0
        %870 = vmatpush1.msra.mxu0 0.0
        %871 = vmatprep.subr.mxu0 0.0
        %872 = vmatpush1.msra.mxu0 0.0
        %873 = vmatprep.subr.mxu0 0.0
        %874 = vmatpush1.msra.mxu0 0.0
        %875 = vmatprep.subr.mxu0 0.0
        %876 = vmatpush1.msra.mxu0 0.0
        %877 = vmatprep.subr.mxu0 0.0
        %878 = vmatpush1.msra.mxu0 0.0
        %879 = vmatprep.subr.mxu0 0.0
        %880 = vmatpush1.msra.mxu0 0.0
        %881 = vmatprep.subr.mxu0 0.0
        %882 = vmatpush1.msra.mxu0 0.0
        %883 = vmatprep.subr.mxu0 0.0
        %884 = vmatpush1.msra.mxu0 0.0
        %885 = vmatprep.subr.mxu0 0.0
        %886 = vmatpush1.msra.mxu0 0.0
        %887 = vmatprep.subr.mxu0 0.0
        %888 = vmatpush1.msra.mxu0 0.0
        %889 = vmatprep.subr.mxu0 0.0
        %890 = vmatpush1.msra.mxu0 0.0
        %891 = vmatprep.subr.mxu0 0.0
        %892 = vmatpush1.msra.mxu0 0.0
        %893 = vmatprep.subr.mxu0 0.0
        %894 = vmatpush1.msra.mxu0 0.0
        %895 = vmatprep.subr.mxu0 0.0
        %896 = vmatpush1.msra.mxu0 0.0
        %897 = vmatprep.subr.mxu0 0.0
        %898 = vmatpush1.msra.mxu0 0.0
        %899 = vmatprep.subr.mxu0 0.0
        %900 = vmatpush1.msra.mxu0 0.0
        %901 = vmatprep.subr.mxu0 0.0
        %902 = vmatpush1.msra.mxu0 0.0
        %903 = vmatprep.subr.mxu0 0.0
        %904 = vmatpush1.msra.mxu0 0.0
        %905 = vmatprep.subr.mxu0 0.0
        %906 = vmatpush1.msra.mxu0 0.0
        %907 = vmatprep.subr.mxu0 0.0
        %908 = vmatpush1.msra.mxu0 0.0
        %909 = vmatprep.mubr.f32.mxu0 0.0
        %910 = vmatmul.mubr.f32.gmra.mrb[0].mxu0 %v834
        %v911 = vpop.f32.mrb[0].mxu0
        %v912 = vadd.f32 0.0, %v911
        %v913 = vpop.f32.mrb[0].mxu0
        %914 = vmatprep.mubr.f32.mxu0 0.0
        %915 = vmatmul.mubr.f32.gmra.mrb[0].mxu0 %v837
        %v916 = vpop.f32.mrb[0].mxu0
        %v917 = vadd.f32 0.0, %v916
        %v918 = vpop.f32.mrb[0].mxu0
        %919 = vmatprep.mubr.f32.mxu0 0.0
        %920 = vmatmul.mubr.f32.gmra.mrb[0].mxu0 %v840
        %v921 = vpop.f32.mrb[0].mxu0
        %v922 = vadd.f32 0.0, %v921
        %v923 = vpop.f32.mrb[0].mxu0
        %924 = vmatprep.mubr.f32.mxu0 0.0
        %925 = vmatmul.mubr.f32.gmra.mrb[0].mxu0 %v843
        %v926 = vpop.f32.mrb[0].mxu0
        %v927 = vadd.f32 0.0, %v926
        %v928 = vpop.f32.mrb[0].mxu0
        %929 = vdwg.mxu0
        %934 = vrot.lane.b32.xlu0 %v912, 64
        %v935 = vpop.permute.xlu0 %934
        %936 = vrot.lane.b32.xlu0 %v917, 64
        %v937 = vpop.permute.xlu0 %936
        %938 = vrot.lane.b32.xlu0 %v922, 64
        %v939 = vpop.permute.xlu0 %938
        %940 = vrot.lane.b32.xlu0 %v927, 64
        %v941 = vpop.permute.xlu0 %940
        %vm946 = vcmask 785920
        %947 = vst.msk [vmem:[%s228] sm:$0xff] %vm946, %v935
        %948 = vst.msk [vmem:[%s228 + $0x8] sm:$0xff] %vm946, %v937
        %949 = vst.msk [vmem:[%s228 + $0x10] sm:$0xff] %vm946, %v939
        %950 = vst.msk [vmem:[%s228 + $0x18] sm:$0xff] %vm946, %v941
        %v951 = vld [vmem:[%s233] sm:$0xff]
        %v952 = vld [vmem:[%s233 + $0x8] sm:$0xff]
        %v953 = vld [vmem:[%s233 + $0x10] sm:$0xff]
        %v954 = vld [vmem:[%s233 + $0x18] sm:$0xff]
        %v955 = vld [vmem:[%s1 + $0x3] sm:$0x1]
        %957 = vset.pattern.permute.xlu0 3
        %958 = vperm.xlu0 %957, %v951
        %v959 = vpop.permute.xlu0 %958
        %962 = vset.pattern.permute.xlu0 3
        %963 = vperm.xlu0 %962, %v952
        %v964 = vpop.permute.xlu0 %963
        %967 = vset.pattern.permute.xlu0 3
        %968 = vperm.xlu0 %967, %v953
        %v969 = vpop.permute.xlu0 %968
        %972 = vset.pattern.permute.xlu0 3
        %973 = vperm.xlu0 %972, %v954
        %v974 = vpop.permute.xlu0 %973
        %v976 = vlaneseq
        %v977 = vshrl.u32 %v976, 7
        %v978 = vsub.s32 0, %v977
        %v979 = vrot.slane %v955, %v978
        %v980 = vadd.f32 %v959, %v979
        %v981 = vadd.f32 %v964, %v979
        %v982 = vadd.f32 %v969, %v979
        %v983 = vadd.f32 %v974, %v979
        %vm984 = vcmp.gt.f32.partialorder %v980, 0.0
        %vm985 = vcmp.gt.f32.partialorder %v981, 0.0
        %vm986 = vcmp.gt.f32.partialorder %v982, 0.0
        %vm987 = vcmp.gt.f32.partialorder %v983, 0.0
        %v988 = vmul.f32 %v980, 0.2
        %v989 = vmul.f32 %v981, 0.2
        %v990 = vmul.f32 %v982, 0.2
        %v991 = vmul.f32 %v983, 0.2
        %v992 = vsel %vm984, %v980, %v988
        %v993 = vsel %vm985, %v981, %v989
        %v994 = vsel %vm986, %v982, %v990
        %v995 = vsel %vm987, %v983, %v991
        %v996 = vsel %vm241, %v992, -9e+15
        %v997 = vsel %vm242, %v993, -9e+15
        %v998 = vsel %vm243, %v994, -9e+15
        %v999 = vsel %vm244, %v995, -9e+15
        %v1000 = vsel %vm294, %v996, -inf
        %1001 = vmax.xlane.f32.xlu0 %v1000
        %v1002 = vpop.xlane.xlu0 %1001
        %v1003 = vsel %vm294, %v997, -inf
        %1004 = vmax.xlane.f32.xlu0 %v1003
        %v1005 = vpop.xlane.xlu0 %1004
        %v1006 = vsel %vm294, %v998, -inf
        %1007 = vmax.xlane.f32.xlu0 %v1006
        %v1008 = vpop.xlane.xlu0 %1007
        %v1009 = vsel %vm294, %v999, -inf
        %1010 = vmax.xlane.f32.xlu0 %v1009
        %v1011 = vpop.xlane.xlu0 %1010
        %v1012 = vsub.f32 %v996, %v1002
        %v1013 = vsub.f32 %v997, %v1005
        %v1014 = vsub.f32 %v998, %v1008
        %v1015 = vsub.f32 %v999, %v1011
        %v1016 = vmul.f32 %v1012, 1.442695
        %v1017 = vpow.pop %v1016
        %v1018 = vmul.f32 %v1013, 1.442695
        %v1019 = vpow.pop %v1018
        %v1020 = vmul.f32 %v1014, 1.442695
        %v1021 = vpow.pop %v1020
        %v1022 = vmul.f32 %v1015, 1.442695
        %v1023 = vpow.pop %v1022
        %v1024 = vsel %vm294, %v1017, 0.0
        %1025 = vadd.xlane.f32.xlu0 %v1024
        %v1026 = vpop.xlane.xlu0 %1025
        %v1027 = vsel %vm294, %v1019, 0.0
        %1028 = vadd.xlane.f32.xlu0 %v1027
        %v1029 = vpop.xlane.xlu0 %1028
        %v1030 = vsel %vm294, %v1021, 0.0
        %1031 = vadd.xlane.f32.xlu0 %v1030
        %v1032 = vpop.xlane.xlu0 %1031
        %v1033 = vsel %vm294, %v1023, 0.0
        %1034 = vadd.xlane.f32.xlu0 %v1033
        %v1035 = vpop.xlane.xlu0 %1034
        %v1036 = vrcp.pop %v1026
        %v1037 = vrcp.pop %v1029
        %v1038 = vrcp.pop %v1032
        %v1039 = vrcp.pop %v1035
        %v1040 = vmul.f32 %v1017, %v1036
        %v1041 = vmul.f32 %v1019, %v1037
        %v1042 = vmul.f32 %v1021, %v1038
        %v1043 = vmul.f32 %v1023, %v1039
        %v1044 = vld [vmem:[%s3] sm:$0xff]
        %v1045 = vld [vmem:[%s3 + $0x8] sm:$0xff]
        %v1046 = vld [vmem:[%s3 + $0x10] sm:$0xff]
        %v1047 = vld [vmem:[%s3 + $0x18] sm:$0xff]
        %v1048 = vld [vmem:[%s3 + $0x20] sm:$0xff]
        %v1049 = vld [vmem:[%s3 + $0x28] sm:$0xff]
        %v1050 = vld [vmem:[%s3 + $0x30] sm:$0xff]
        %v1051 = vld [vmem:[%s3 + $0x38] sm:$0xff]
        %1060 = vrot.lane.b32.xlu0 %v1044, 32
        %v1061 = vpop.permute.xlu0 %1060
        %1062 = vrot.lane.b32.xlu0 %v1045, 32
        %v1063 = vpop.permute.xlu0 %1062
        %1064 = vrot.lane.b32.xlu0 %v1046, 32
        %v1065 = vpop.permute.xlu0 %1064
        %1066 = vrot.lane.b32.xlu0 %v1047, 32
        %v1067 = vpop.permute.xlu0 %1066
        %1068 = vrot.lane.b32.xlu0 %v1048, 32
        %v1069 = vpop.permute.xlu0 %1068
        %1070 = vrot.lane.b32.xlu0 %v1049, 32
        %v1071 = vpop.permute.xlu0 %1070
        %1072 = vrot.lane.b32.xlu0 %v1050, 32
        %v1073 = vpop.permute.xlu0 %1072
        %1074 = vrot.lane.b32.xlu0 %v1051, 32
        %v1075 = vpop.permute.xlu0 %1074
        %v1085 = vsel %vm294, %v1040, 0
        %v1088 = vsel %vm294, %v1041, 0
        %v1091 = vsel %vm294, %v1042, 0
        %v1094 = vsel %vm294, %v1043, 0
        %1096 = vmatprep.subr.mxu0 0.0
        %1097 = vmatpush1.msra.mxu0 %v1061
        %1098 = vmatprep.subr.mxu0 0.0
        %1099 = vmatpush1.msra.mxu0 %v1063
        %1100 = vmatprep.subr.mxu0 0.0
        %1101 = vmatpush1.msra.mxu0 %v1065
        %1102 = vmatprep.subr.mxu0 0.0
        %1103 = vmatpush1.msra.mxu0 %v1067
        %1104 = vmatprep.subr.mxu0 0.0
        %1105 = vmatpush1.msra.mxu0 %v1069
        %1106 = vmatprep.subr.mxu0 0.0
        %1107 = vmatpush1.msra.mxu0 %v1071
        %1108 = vmatprep.subr.mxu0 0.0
        %1109 = vmatpush1.msra.mxu0 %v1073
        %1110 = vmatprep.subr.mxu0 0.0
        %1111 = vmatpush1.msra.mxu0 %v1075
        %1112 = vmatprep.subr.mxu0 0.0
        %1113 = vmatpush1.msra.mxu0 0.0
        %1114 = vmatprep.subr.mxu0 0.0
        %1115 = vmatpush1.msra.mxu0 0.0
        %1116 = vmatprep.subr.mxu0 0.0
        %1117 = vmatpush1.msra.mxu0 0.0
        %1118 = vmatprep.subr.mxu0 0.0
        %1119 = vmatpush1.msra.mxu0 0.0
        %1120 = vmatprep.subr.mxu0 0.0
        %1121 = vmatpush1.msra.mxu0 0.0
        %1122 = vmatprep.subr.mxu0 0.0
        %1123 = vmatpush1.msra.mxu0 0.0
        %1124 = vmatprep.subr.mxu0 0.0
        %1125 = vmatpush1.msra.mxu0 0.0
        %1126 = vmatprep.subr.mxu0 0.0
        %1127 = vmatpush1.msra.mxu0 0.0
        %1128 = vmatprep.subr.mxu0 0.0
        %1129 = vmatpush1.msra.mxu0 0.0
        %1130 = vmatprep.subr.mxu0 0.0
        %1131 = vmatpush1.msra.mxu0 0.0
        %1132 = vmatprep.subr.mxu0 0.0
        %1133 = vmatpush1.msra.mxu0 0.0
        %1134 = vmatprep.subr.mxu0 0.0
        %1135 = vmatpush1.msra.mxu0 0.0
        %1136 = vmatprep.subr.mxu0 0.0
        %1137 = vmatpush1.msra.mxu0 0.0
        %1138 = vmatprep.subr.mxu0 0.0
        %1139 = vmatpush1.msra.mxu0 0.0
        %1140 = vmatprep.subr.mxu0 0.0
        %1141 = vmatpush1.msra.mxu0 0.0
        %1142 = vmatprep.subr.mxu0 0.0
        %1143 = vmatpush1.msra.mxu0 0.0
        %1144 = vmatprep.subr.mxu0 0.0
        %1145 = vmatpush1.msra.mxu0 0.0
        %1146 = vmatprep.subr.mxu0 0.0
        %1147 = vmatpush1.msra.mxu0 0.0
        %1148 = vmatprep.subr.mxu0 0.0
        %1149 = vmatpush1.msra.mxu0 0.0
        %1150 = vmatprep.subr.mxu0 0.0
        %1151 = vmatpush1.msra.mxu0 0.0
        %1152 = vmatprep.subr.mxu0 0.0
        %1153 = vmatpush1.msra.mxu0 0.0
        %1154 = vmatprep.subr.mxu0 0.0
        %1155 = vmatpush1.msra.mxu0 0.0
        %1156 = vmatprep.subr.mxu0 0.0
        %1157 = vmatpush1.msra.mxu0 0.0
        %1158 = vmatprep.subr.mxu0 0.0
        %1159 = vmatpush1.msra.mxu0 0.0
        %1160 = vmatprep.mubr.f32.mxu0 0.0
        %1161 = vmatmul.mubr.f32.gmra.mrb[0].mxu0 %v1085
        %v1162 = vpop.f32.mrb[0].mxu0
        %v1163 = vadd.f32 0.0, %v1162
        %v1164 = vpop.f32.mrb[0].mxu0
        %1165 = vmatprep.mubr.f32.mxu0 0.0
        %1166 = vmatmul.mubr.f32.gmra.mrb[0].mxu0 %v1088
        %v1167 = vpop.f32.mrb[0].mxu0
        %v1168 = vadd.f32 0.0, %v1167
        %v1169 = vpop.f32.mrb[0].mxu0
        %1170 = vmatprep.mubr.f32.mxu0 0.0
        %1171 = vmatmul.mubr.f32.gmra.mrb[0].mxu0 %v1091
        %v1172 = vpop.f32.mrb[0].mxu0
        %v1173 = vadd.f32 0.0, %v1172
        %v1174 = vpop.f32.mrb[0].mxu0
        %1175 = vmatprep.mubr.f32.mxu0 0.0
        %1176 = vmatmul.mubr.f32.gmra.mrb[0].mxu0 %v1094
        %v1177 = vpop.f32.mrb[0].mxu0
        %v1178 = vadd.f32 0.0, %v1177
        %v1179 = vpop.f32.mrb[0].mxu0
        %1180 = vdwg.mxu0
        %1185 = vrot.lane.b32.xlu0 %v1163, 96
        %v1186 = vpop.permute.xlu0 %1185
        %1187 = vrot.lane.b32.xlu0 %v1168, 96
        %v1188 = vpop.permute.xlu0 %1187
        %1189 = vrot.lane.b32.xlu0 %v1173, 96
        %v1190 = vpop.permute.xlu0 %1189
        %1191 = vrot.lane.b32.xlu0 %v1178, 96
        %v1192 = vpop.permute.xlu0 %1191
        %vm1197 = vcmask 1048320
        %1198 = vst.msk [vmem:[%s228] sm:$0xff] %vm1197, %v1186
        %1199 = vst.msk [vmem:[%s228 + $0x8] sm:$0xff] %vm1197, %v1188
        %1200 = vst.msk [vmem:[%s228 + $0x10] sm:$0xff] %vm1197, %v1190
        %1201 = vst.msk [vmem:[%s228 + $0x18] sm:$0xff] %vm1197, %v1192
        %s1202 = sand.u32 %s123, 1
        %s1203 = scalar_lea.sflag [#allocation4], %s1202
        %s1204 = sand.u32 %s123, 1
        %s1205 = smul.addr %s1204, 32
        %s1206 = scalar_lea.vmem [#allocation5], %s1205
        // Predicated region
        $region41: #{tpu_custom_call.1} parent=35 // pred_check
          %p1207 = pneg %p133
        $region42: #{tpu_custom_call.1} parent=35 // pred_check_branch
          %1209 = sbr.rel (%p1207) target = $region44
        $region43: #{tpu_custom_call.1} parent=35 // pred_region
          %s1210 = smul.u32 4, %s21
          %s1212 = ssub.s32 512, 512
          %1213 = vsyncadd %s1203, %s1212
          %s1214 = smul.addr %s1210, 128
          %s1215 = scalar_lea.hbm %s4, %s1214
          %s1216 = sshll.u32 %s1206, 4
          %s1217 = int_to_ptr.vmem [resolvable:$true] %s1216
          %1222 = dma.vmem_to_hbm [thread:$0]  %s1217, 512, %s1215, %s1203, 128, 128, 8
        $region44: #{tpu_custom_call.1} parent=35 // pred_fallthru
          _
      $region36: #{tpu_custom_call.1} parent=5 // pred_fallthru
        _
      %p1223 = scmp.le.s32.totalorder 2, %s16
      // Predicated region
      $region45: #{tpu_custom_call.1} parent=5 // pred_check
        %p1224 = pneg %p1223
      $region46: #{tpu_custom_call.1} parent=5 // pred_check_branch
        %1226 = sbr.rel (%p1224) target = $region48
      $region47: #{tpu_custom_call.1} parent=5 // pred_region
        %s1227 = ssub.s32 %s16, 2
        // Predicated region
        $region49: #{tpu_custom_call.1} parent=47 // pred_check
          %p1228 = pneg %p139
        $region50: #{tpu_custom_call.1} parent=47 // pred_check_branch
          %1230 = sbr.rel (%p1228) target = $region52
        $region51: #{tpu_custom_call.1} parent=47 // pred_region
          %s1231 = sand.u32 %s124, 1
          %s1232 = scalar_lea.sflag [#allocation4], %s1231
          %s1233 = sand.u32 %s124, 1
          %s1234 = smul.addr %s1233, 32
          %s1235 = scalar_lea.vmem [#allocation5], %s1234
          %1236 = dma.done %s1232, 512
        $region52: #{tpu_custom_call.1} parent=47 // pred_fallthru
          _
      $region48: #{tpu_custom_call.1} parent=5 // pred_fallthru
        _
    $region6: #{tpu_custom_call.1} parent=1 // loop_footer
      %s20 = sadd.s32 1, %s16
    $region7: #{tpu_custom_call.1} parent=1 // loop_footer_branch
      %15 = sbr.rel target = $region3
    $region8: #{tpu_custom_call.1} parent=1 // loop_exit
      _
    %1237 = vsyncpa [#allocation3], 1
    %s1238 = scalar_lea.sflag [#allocation3], 1
    %1239 = vsyncpa %s1238, 1
    %1240 = vsyncpa [#allocation4], 1
    %s1241 = scalar_lea.sflag [#allocation4], 1
    %1242 = vsyncpa %s1241, 1

</llo_original>
